<compile_context>
chip_gen: v6e
topology: v6e:2x2x1
jax: 0.10.0
libtpu: 0.0.40
codegen_flags: <defaults>
</compile_context>

<pallas_src>
import functools

import jax
import jax.numpy as jnp
import numpy as np
from jax.experimental import pallas as pl
from jax.experimental.pallas import tpu as pltpu


def _sag_pool_kernel(a_ref, x_ref, wrel_ref, wroot_ref, b_ref,
                     x_out_ref, perm_ref, score_ref,
                     attn_scr, sel_scr,
                     *, k, k_pad, n, idx_bits, multiplier):
    """GraphConv(F->1) score + top-k select + gather/scale, all in VMEM.

    a_ref     : (N, N)     dense adjacency, A[dst, src] = multiplicity of edge src->dst
    x_ref     : (N, F)     node features
    wrel_ref  : (F, 1)     GraphConv lin_rel weight  * sign(w_sel)
    wroot_ref : (F, 1)     GraphConv lin_root weight * sign(w_sel)
    b_ref     : (1,)       SMEM scalar: lin_rel bias * sign(w_sel)
    x_out_ref : (k_pad, F) pooled features  x[perm] * tanh(score) * multiplier
    perm_ref  : (k,)       SMEM int32 selected node indices (descending score)
    score_ref : (k_pad, 1) tanh scores of the selected nodes (pad rows = tanh(0))
    attn_scr  : (N, 1)     VMEM scratch: raw sign-folded scores
    sel_scr   : (k_pad, 1) VMEM scratch: raw scores of the selected nodes
    """
    x = x_ref[...]
    f = x_out_ref.shape[1]

    # GraphConv collapsed (project-then-aggregate; sign(w_sel) already folded):
    #   attn[dst] = sum_src A[dst,src] * (x[src].w_rel) + x[dst].w_root + b
    xr = jnp.dot(x, wrel_ref[...], preferred_element_type=jnp.float32)      # (N, 1)
    xroot = jnp.dot(x, wroot_ref[...], preferred_element_type=jnp.float32)  # (N, 1)
    attn = (jnp.dot(a_ref[...], xr, preferred_element_type=jnp.float32)
            + xroot + b_ref[0])                                             # (N, 1)
    attn_scr[...] = attn               # exact raw scores for per-selection gather

    # Monotone-sortable int32 key with the inverted node index in the low bits.
    bits = pltpu.bitcast(attn, jnp.int32)
    sortable = jnp.where(bits >= 0, bits, bits ^ jnp.int32(0x7FFFFFFF))
    iota = jax.lax.broadcasted_iota(jnp.int32, (n, 1), 0)
    key = (sortable & jnp.int32(-(1 << idx_bits))) | ((n - 1) - iota)

    # Deterministic pad rows (wrapper slices [:k]); one masked store each.
    if k_pad > k:
        x_out_ref[pl.ds(k, k_pad - k), :] = jnp.zeros((k_pad - k, f), x_out_ref.dtype)
        sel_scr[pl.ds(k, k_pad - k), :] = jnp.zeros((k_pad - k, 1), jnp.float32)

    neg_min = jnp.int32(-(2 ** 31))
    idx_mask = jnp.int32((1 << idx_bits) - 1)
    # k is small & static -> full unroll.
    # TODO(synk): switch to lax.fori_loop if k is ever made large or dynamic.
    for t in range(k):
        kmax = jnp.max(key)                        # single cross-lane reduce (XLU)
        idx = (n - 1) - (kmax & idx_mask)          # scalar decode, off the reduce chain
        perm_ref[t] = idx
        # Raw gathered row + raw score; tanh/scale is batched after the loop.
        x_out_ref[pl.ds(t, 1), :] = x_ref[pl.ds(idx, 1), :].astype(x_out_ref.dtype)
        sel_scr[pl.ds(t, 1), :] = attn_scr[pl.ds(idx, 1), :]
        # Keys are unique -> this masks exactly the selected node.
        key = jnp.where(key == kmax, neg_min, key)

    # Batched epilogue: one EUP tanh pass, one broadcast scale, dense stores.
    sc = jnp.tanh(sel_scr[...])                                  # (k_pad, 1)
    score_ref[...] = sc
    x_out_ref[...] = (x_out_ref[...] * (sc * multiplier)).astype(x_out_ref.dtype)


def sag_pool_fixed_num_nodes(x, edge_index, params, *, num_output_nodes=5,
                             multiplier=1.0):
    """Forward pass mirroring SAGPoolingFixedNumNodes (single graph, batch=None).

    Returns (x_out, new_edge_index, edge_attr, batch_out, perm, score, edge_mask).
    new_edge_index has static shape (2, E); edges not kept are marked -1 and
    flagged False in edge_mask (dynamic-size compaction is not static-shape friendly).
    """
    N, F = x.shape
    k = num_output_nodes
    assert k <= N, "num_output_nodes must be <= number of nodes"
    k_pad = ((k + 7) // 8) * 8                    # pooled output padded to full sublanes
    idx_bits = max(1, (N - 1).bit_length())       # low key bits carrying the node index

    # --- glue: dense adjacency A[dst, src] += 1 for every edge src -> dst ----------
    src = edge_index[0]
    dst = edge_index[1]
    A = jnp.zeros((N, N), jnp.float32).at[dst, src].add(1.0)

    # sign(w_sel) folded into weights/bias (zero extra kernel work).
    # Note: w_sel == 0 is degenerate (reference would be NaN); here it yields
    # all-zero scores and picks nodes by index -- documented divergence.
    sgn = jnp.sign(jnp.asarray(params["w_sel"], jnp.float32))
    w_rel = (jnp.asarray(params["w_rel"], jnp.float32) * sgn).reshape(F, 1)
    w_root = (jnp.asarray(params["w_root"], jnp.float32) * sgn).reshape(F, 1)
    b = (jnp.asarray(params["b_rel"], jnp.float32) * sgn).reshape(1)

    kernel = functools.partial(_sag_pool_kernel, k=k, k_pad=k_pad, n=N,
                               idx_bits=idx_bits, multiplier=float(multiplier))

    x_out_pad, perm, score_pad = pl.pallas_call(
        kernel,
        out_shape=(
            jax.ShapeDtypeStruct((k_pad, F), x.dtype),
            jax.ShapeDtypeStruct((k,), jnp.int32),
            jax.ShapeDtypeStruct((k_pad, 1), jnp.float32),
        ),
        in_specs=[
            pl.BlockSpec(memory_space=pltpu.MemorySpace.VMEM),   # A
            pl.BlockSpec(memory_space=pltpu.MemorySpace.VMEM),   # x
            pl.BlockSpec(memory_space=pltpu.MemorySpace.VMEM),   # w_rel*sign  (F,1)
            pl.BlockSpec(memory_space=pltpu.MemorySpace.VMEM),   # w_root*sign (F,1)
            pl.BlockSpec(memory_space=pltpu.MemorySpace.SMEM),   # b_rel*sign  (1,)
        ],
        out_specs=(
            pl.BlockSpec(memory_space=pltpu.MemorySpace.VMEM),   # x_out (padded)
            pl.BlockSpec(memory_space=pltpu.MemorySpace.SMEM),   # perm
            pl.BlockSpec(memory_space=pltpu.MemorySpace.VMEM),   # score (padded)
        ),
        scratch_shapes=[
            pltpu.VMEM((N, 1), jnp.float32),        # raw scores
            pltpu.VMEM((k_pad, 1), jnp.float32),    # selected raw scores
        ],
    )(A, x, w_rel, w_root, b)

    x_out = x_out_pad[:k]
    score = score_pad[:k, 0]

    # --- glue: FilterEdges (re-index edges to the kept nodes) ----------------------
    # TODO(synk): torch masked-select produces a dynamic-size edge list; here we keep
    #             static shape (2, E) with -1 / edge_mask instead of compacting.
    cluster = jnp.full((N,), -1, jnp.int32).at[perm].set(jnp.arange(k, dtype=jnp.int32))
    new_src = cluster[src]
    new_dst = cluster[dst]
    edge_mask = (new_src >= 0) & (new_dst >= 0)
    new_edge_index = jnp.where(edge_mask[None, :], jnp.stack([new_src, new_dst]), -1)

    batch_out = jnp.zeros((k,), jnp.int32)   # single graph -> batch of zeros
    edge_attr = None                          # edge_attr=None in -> None out

    return x_out, new_edge_index, edge_attr, batch_out, perm, score, edge_mask


def _reference_forward(x, edge_index, params, k, multiplier):
    """Pure-JAX reference of the PyTorch semantics (for a correctness check)."""
    N, F = x.shape
    src, dst = edge_index[0], edge_index[1]
    A = jnp.zeros((N, N), jnp.float32).at[dst, src].add(1.0)
    agg = A @ x
    attn = agg @ params["w_rel"].T + params["b_rel"] + x @ params["w_root"].T  # (N,1)
    score_all = jnp.tanh(attn[:, 0] * params["w_sel"] / jnp.abs(params["w_sel"]))
    vals, perm = jax.lax.top_k(score_all, k)
    x_out = x[perm] * vals[:, None] * multiplier
    return x_out, perm, vals


if __name__ == "__main__":
    N, F, E, K = 16, 128, 48, 5          # nodes, in_channels, edges, num_output_nodes
    MULT = 1.0

    key = jax.random.PRNGKey(0)
    kx, ke, k1, k2 = jax.random.split(key, 4)

    x = jax.random.normal(kx, (N, F), jnp.float32)
    edge_index = jax.random.randint(ke, (2, E), 0, N, jnp.int32)

    params = {
        "w_rel": 0.1 * jax.random.normal(k1, (1, F), jnp.float32),   # GraphConv lin_rel
        "w_root": 0.1 * jax.random.normal(k2, (1, F), jnp.float32),  # GraphConv lin_root
        "b_rel": jnp.float32(0.05),                                  # GraphConv lin_rel bias
        "w_sel": jnp.float32(0.7),                                   # SelectTopK weight (1,1)
    }

    outs = sag_pool_fixed_num_nodes(x, edge_index, params,
                                    num_output_nodes=K, multiplier=MULT)
    outs = jax.block_until_ready(outs)
    x_out, new_edge_index, edge_attr, batch_out, perm, score, edge_mask = outs

    # sanity check against a pure-JAX reference
    x_ref, perm_ref, score_ref = _reference_forward(x, edge_index, params, K, MULT)
    assert np.array_equal(np.asarray(perm), np.asarray(perm_ref)), "perm mismatch"
    assert np.allclose(np.asarray(score), np.asarray(score_ref), atol=1e-5), "score mismatch"
    assert np.allclose(np.asarray(x_out), np.asarray(x_ref), atol=1e-4), "x mismatch"
    assert x_out.shape == (K, F) and perm.shape == (K,) and batch_out.shape == (K,)

    print("KERNEL_OK")
</pallas_src>

<mosaic_0001>
module attributes {stable_mosaic.version = 11 : i64} {
  func.func @_sag_pool_kernel(%arg0: memref<16x16xf32, #tpu.memory_space<vmem>>, %arg1: memref<16x128xf32, #tpu.memory_space<vmem>>, %arg2: memref<128x1xf32, #tpu.memory_space<vmem>>, %arg3: memref<128x1xf32, #tpu.memory_space<vmem>>, %arg4: memref<1xf32, #tpu.memory_space<smem>>, %arg5: memref<8x128xf32, #tpu.memory_space<vmem>>, %arg6: memref<5xi32, #tpu.memory_space<smem>>, %arg7: memref<8x1xf32, #tpu.memory_space<vmem>>, %arg8: memref<16x1xf32, #tpu.memory_space<vmem>>, %arg9: memref<8x1xf32, #tpu.memory_space<vmem>>) attributes {dimension_semantics = [], scalar_prefetch = 0 : i64, scratch_operands = 2 : i64, tpu.core_type = #tpu.core_type<tc>} {
    %c0 = arith.constant 0 : index
    %c0_0 = arith.constant 0 : index
    %0 = vector.load %arg1[%c0, %c0_0] : memref<16x128xf32, #tpu.memory_space<vmem>>, vector<16x128xf32>
    %c0_1 = arith.constant 0 : index
    %c0_2 = arith.constant 0 : index
    %1 = vector.load %arg2[%c0_1, %c0_2] : memref<128x1xf32, #tpu.memory_space<vmem>>, vector<128x1xf32>
    %cst = arith.constant dense<0.000000e+00> : vector<16x1xf32>
    %2 = tpu.matmul %0, %1, %cst {dimension_numbers = #tpu.dot_dimension_numbers<[1], [0], [0], [1], [0, 0, 1, 1], [], []>} : vector<16x128xf32>, vector<128x1xf32>, vector<16x1xf32> -> vector<16x1xf32>
    %c0_3 = arith.constant 0 : index
    %c0_4 = arith.constant 0 : index
    %3 = vector.load %arg3[%c0_3, %c0_4] : memref<128x1xf32, #tpu.memory_space<vmem>>, vector<128x1xf32>
    %cst_5 = arith.constant dense<0.000000e+00> : vector<16x1xf32>
    %4 = tpu.matmul %0, %3, %cst_5 {dimension_numbers = #tpu.dot_dimension_numbers<[1], [0], [0], [1], [0, 0, 1, 1], [], []>} : vector<16x128xf32>, vector<128x1xf32>, vector<16x1xf32> -> vector<16x1xf32>
    %c0_6 = arith.constant 0 : index
    %c0_7 = arith.constant 0 : index
    %5 = vector.load %arg0[%c0_6, %c0_7] : memref<16x16xf32, #tpu.memory_space<vmem>>, vector<16x16xf32>
    %cst_8 = arith.constant dense<0.000000e+00> : vector<16x1xf32>
    %6 = tpu.matmul %5, %2, %cst_8 {dimension_numbers = #tpu.dot_dimension_numbers<[1], [0], [0], [1], [0, 0, 1, 1], [], []>} : vector<16x16xf32>, vector<16x1xf32>, vector<16x1xf32> -> vector<16x1xf32>
    %7 = arith.addf %6, %4 : vector<16x1xf32>
    %c0_9 = arith.constant 0 : index
    %8 = memref.load %arg4[%c0_9] : memref<1xf32, #tpu.memory_space<smem>>
    %9 = vector.broadcast %8 : f32 to vector<16x1xf32>
    %10 = arith.addf %7, %9 : vector<16x1xf32>
    %c0_10 = arith.constant 0 : index
    %c0_11 = arith.constant 0 : index
    %11 = vector.load %arg8[%c0_10, %c0_11] : memref<16x1xf32, #tpu.memory_space<vmem>>, vector<16x1xf32>
    tpu.vector_store %arg8[%c0_10, %c0_11], %10 {strides = array<i32>} : memref<16x1xf32, #tpu.memory_space<vmem>>, vector<16x1xf32>,
    %12 = tpu.bitcast %10 : vector<16x1xf32> -> vector<16x1xi32>
    %c0_i32 = arith.constant 0 : i32
    %13 = vector.broadcast %c0_i32 : i32 to vector<16x1xi32>
    %14 = arith.cmpi sge, %12, %13 : vector<16x1xi32>
    %c2147483647_i32 = arith.constant 2147483647 : i32
    %15 = vector.broadcast %c2147483647_i32 : i32 to vector<16x1xi32>
    %16 = arith.xori %12, %15 : vector<16x1xi32>
    %17 = arith.select %14, %12, %16 : vector<16x1xi1>, vector<16x1xi32>
    %18 = tpu.iota {dimensions = array<i32: 0>} : vector<16x1xi32>
    %c-16_i32 = arith.constant -16 : i32
    %19 = vector.broadcast %c-16_i32 : i32 to vector<16x1xi32>
    %20 = arith.andi %17, %19 : vector<16x1xi32>
    %c15_i32 = arith.constant 15 : i32
    %21 = vector.broadcast %c15_i32 : i32 to vector<16x1xi32>
    %22 = arith.subi %21, %18 : vector<16x1xi32>
    %23 = arith.ori %20, %22 : vector<16x1xi32>
    %cst_12 = arith.constant 0.000000e+00 : f32
    %24 = vector.broadcast %cst_12 : f32 to vector<3x128xf32>
    %c5 = arith.constant 5 : index
    %c0_13 = arith.constant 0 : index
    %25 = vector.load %arg5[%c5, %c0_13] : memref<8x128xf32, #tpu.memory_space<vmem>>, vector<3x128xf32>
    tpu.vector_store %arg5[%c5, %c0_13], %24 {strides = array<i32>} : memref<8x128xf32, #tpu.memory_space<vmem>>, vector<3x128xf32>,
    %cst_14 = arith.constant 0.000000e+00 : f32
    %26 = vector.broadcast %cst_14 : f32 to vector<3x1xf32>
    %c5_15 = arith.constant 5 : index
    %c0_16 = arith.constant 0 : index
    %27 = vector.load %arg9[%c5_15, %c0_16] : memref<8x1xf32, #tpu.memory_space<vmem>>, vector<3x1xf32>
    tpu.vector_store %arg9[%c5_15, %c0_16], %26 {strides = array<i32>} : memref<8x1xf32, #tpu.memory_space<vmem>>, vector<3x1xf32>,
    %28 = vector.shape_cast %23 : vector<16x1xi32> to vector<1x16x1xi32>
    %cst_17 = arith.constant dense<-2147483648> : vector<1xi32>
    %29 = vector.multi_reduction <maxsi>, %28, %cst_17 [1, 2] : vector<1x16x1xi32> to vector<1xi32>
    %30 = vector.shape_cast %29 : vector<1xi32> to vector<1x1x1xi32>
    %31 = vector.extract %30[0, 0, 0] : i32 from vector<1x1x1xi32>
    %c15_i32_18 = arith.constant 15 : i32
    %32 = arith.andi %31, %c15_i32_18 : i32
    %c15_i32_19 = arith.constant 15 : i32
    %33 = arith.subi %c15_i32_19, %32 : i32
    %c0_20 = arith.constant 0 : index
    %34 = memref.load %arg6[%c0_20] : memref<5xi32, #tpu.memory_space<smem>>
    memref.store %33, %arg6[%c0_20] : memref<5xi32, #tpu.memory_space<smem>>
    %35 = arith.index_cast %33 : i32 to index
    %c0_21 = arith.constant 0 : index
    %36 = vector.load %arg1[%35, %c0_21] : memref<16x128xf32, #tpu.memory_space<vmem>>, vector<1x128xf32>
    %c0_22 = arith.constant 0 : index
    %c0_23 = arith.constant 0 : index
    %37 = vector.load %arg5[%c0_22, %c0_23] : memref<8x128xf32, #tpu.memory_space<vmem>>, vector<1x128xf32>
    tpu.vector_store %arg5[%c0_22, %c0_23], %36 {strides = array<i32>} : memref<8x128xf32, #tpu.memory_space<vmem>>, vector<1x128xf32>,
    %38 = arith.index_cast %33 : i32 to index
    %c0_24 = arith.constant 0 : index
    %39 = vector.load %arg8[%38, %c0_24] : memref<16x1xf32, #tpu.memory_space<vmem>>, vector<1x1xf32>
    %c0_25 = arith.constant 0 : index
    %c0_26 = arith.constant 0 : index
    %40 = vector.load %arg9[%c0_25, %c0_26] : memref<8x1xf32, #tpu.memory_space<vmem>>, vector<1x1xf32>
    tpu.vector_store %arg9[%c0_25, %c0_26], %39 {strides = array<i32>} : memref<8x1xf32, #tpu.memory_space<vmem>>, vector<1x1xf32>,
    %41 = vector.broadcast %31 : i32 to vector<16x1xi32>
    %42 = arith.cmpi eq, %23, %41 : vector<16x1xi32>
    %c-2147483648_i32 = arith.constant -2147483648 : i32
    %43 = vector.broadcast %c-2147483648_i32 : i32 to vector<16x1xi32>
    %44 = arith.select %42, %43, %23 : vector<16x1xi1>, vector<16x1xi32>
    %45 = vector.shape_cast %44 : vector<16x1xi32> to vector<1x16x1xi32>
    %cst_27 = arith.constant dense<-2147483648> : vector<1xi32>
    %46 = vector.multi_reduction <maxsi>, %45, %cst_27 [1, 2] : vector<1x16x1xi32> to vector<1xi32>
    %47 = vector.shape_cast %46 : vector<1xi32> to vector<1x1x1xi32>
    %48 = vector.extract %47[0, 0, 0] : i32 from vector<1x1x1xi32>
    %c15_i32_28 = arith.constant 15 : i32
    %49 = arith.andi %48, %c15_i32_28 : i32
    %c15_i32_29 = arith.constant 15 : i32
    %50 = arith.subi %c15_i32_29, %49 : i32
    %c1 = arith.constant 1 : index
    %51 = memref.load %arg6[%c1] : memref<5xi32, #tpu.memory_space<smem>>
    memref.store %50, %arg6[%c1] : memref<5xi32, #tpu.memory_space<smem>>
    %52 = arith.index_cast %50 : i32 to index
    %c0_30 = arith.constant 0 : index
    %53 = vector.load %arg1[%52, %c0_30] : memref<16x128xf32, #tpu.memory_space<vmem>>, vector<1x128xf32>
    %c1_31 = arith.constant 1 : index
    %c0_32 = arith.constant 0 : index
    %54 = vector.load %arg5[%c1_31, %c0_32] : memref<8x128xf32, #tpu.memory_space<vmem>>, vector<1x128xf32>
    tpu.vector_store %arg5[%c1_31, %c0_32], %53 {strides = array<i32>} : memref<8x128xf32, #tpu.memory_space<vmem>>, vector<1x128xf32>,
    %55 = arith.index_cast %50 : i32 to index
    %c0_33 = arith.constant 0 : index
    %56 = vector.load %arg8[%55, %c0_33] : memref<16x1xf32, #tpu.memory_space<vmem>>, vector<1x1xf32>
    %c1_34 = arith.constant 1 : index
    %c0_35 = arith.constant 0 : index
    %57 = vector.load %arg9[%c1_34, %c0_35] : memref<8x1xf32, #tpu.memory_space<vmem>>, vector<1x1xf32>
    tpu.vector_store %arg9[%c1_34, %c0_35], %56 {strides = array<i32>} : memref<8x1xf32, #tpu.memory_space<vmem>>, vector<1x1xf32>,
    %58 = vector.broadcast %48 : i32 to vector<16x1xi32>
    %59 = arith.cmpi eq, %44, %58 : vector<16x1xi32>
    %c-2147483648_i32_36 = arith.constant -2147483648 : i32
    %60 = vector.broadcast %c-2147483648_i32_36 : i32 to vector<16x1xi32>
    %61 = arith.select %59, %60, %44 : vector<16x1xi1>, vector<16x1xi32>
    %62 = vector.shape_cast %61 : vector<16x1xi32> to vector<1x16x1xi32>
    %cst_37 = arith.constant dense<-2147483648> : vector<1xi32>
    %63 = vector.multi_reduction <maxsi>, %62, %cst_37 [1, 2] : vector<1x16x1xi32> to vector<1xi32>
    %64 = vector.shape_cast %63 : vector<1xi32> to vector<1x1x1xi32>
    %65 = vector.extract %64[0, 0, 0] : i32 from vector<1x1x1xi32>
    %c15_i32_38 = arith.constant 15 : i32
    %66 = arith.andi %65, %c15_i32_38 : i32
    %c15_i32_39 = arith.constant 15 : i32
    %67 = arith.subi %c15_i32_39, %66 : i32
    %c2 = arith.constant 2 : index
    %68 = memref.load %arg6[%c2] : memref<5xi32, #tpu.memory_space<smem>>
    memref.store %67, %arg6[%c2] : memref<5xi32, #tpu.memory_space<smem>>
    %69 = arith.index_cast %67 : i32 to index
    %c0_40 = arith.constant 0 : index
    %70 = vector.load %arg1[%69, %c0_40] : memref<16x128xf32, #tpu.memory_space<vmem>>, vector<1x128xf32>
    %c2_41 = arith.constant 2 : index
    %c0_42 = arith.constant 0 : index
    %71 = vector.load %arg5[%c2_41, %c0_42] : memref<8x128xf32, #tpu.memory_space<vmem>>, vector<1x128xf32>
    tpu.vector_store %arg5[%c2_41, %c0_42], %70 {strides = array<i32>} : memref<8x128xf32, #tpu.memory_space<vmem>>, vector<1x128xf32>,
    %72 = arith.index_cast %67 : i32 to index
    %c0_43 = arith.constant 0 : index
    %73 = vector.load %arg8[%72, %c0_43] : memref<16x1xf32, #tpu.memory_space<vmem>>, vector<1x1xf32>
    %c2_44 = arith.constant 2 : index
    %c0_45 = arith.constant 0 : index
    %74 = vector.load %arg9[%c2_44, %c0_45] : memref<8x1xf32, #tpu.memory_space<vmem>>, vector<1x1xf32>
    tpu.vector_store %arg9[%c2_44, %c0_45], %73 {strides = array<i32>} : memref<8x1xf32, #tpu.memory_space<vmem>>, vector<1x1xf32>,
    %75 = vector.broadcast %65 : i32 to vector<16x1xi32>
    %76 = arith.cmpi eq, %61, %75 : vector<16x1xi32>
    %c-2147483648_i32_46 = arith.constant -2147483648 : i32
    %77 = vector.broadcast %c-2147483648_i32_46 : i32 to vector<16x1xi32>
    %78 = arith.select %76, %77, %61 : vector<16x1xi1>, vector<16x1xi32>
    %79 = vector.shape_cast %78 : vector<16x1xi32> to vector<1x16x1xi32>
    %cst_47 = arith.constant dense<-2147483648> : vector<1xi32>
    %80 = vector.multi_reduction <maxsi>, %79, %cst_47 [1, 2] : vector<1x16x1xi32> to vector<1xi32>
    %81 = vector.shape_cast %80 : vector<1xi32> to vector<1x1x1xi32>
    %82 = vector.extract %81[0, 0, 0] : i32 from vector<1x1x1xi32>
    %c15_i32_48 = arith.constant 15 : i32
    %83 = arith.andi %82, %c15_i32_48 : i32
    %c15_i32_49 = arith.constant 15 : i32
    %84 = arith.subi %c15_i32_49, %83 : i32
    %c3 = arith.constant 3 : index
    %85 = memref.load %arg6[%c3] : memref<5xi32, #tpu.memory_space<smem>>
    memref.store %84, %arg6[%c3] : memref<5xi32, #tpu.memory_space<smem>>
    %86 = arith.index_cast %84 : i32 to index
    %c0_50 = arith.constant 0 : index
    %87 = vector.load %arg1[%86, %c0_50] : memref<16x128xf32, #tpu.memory_space<vmem>>, vector<1x128xf32>
    %c3_51 = arith.constant 3 : index
    %c0_52 = arith.constant 0 : index
    %88 = vector.load %arg5[%c3_51, %c0_52] : memref<8x128xf32, #tpu.memory_space<vmem>>, vector<1x128xf32>
    tpu.vector_store %arg5[%c3_51, %c0_52], %87 {strides = array<i32>} : memref<8x128xf32, #tpu.memory_space<vmem>>, vector<1x128xf32>,
    %89 = arith.index_cast %84 : i32 to index
    %c0_53 = arith.constant 0 : index
    %90 = vector.load %arg8[%89, %c0_53] : memref<16x1xf32, #tpu.memory_space<vmem>>, vector<1x1xf32>
    %c3_54 = arith.constant 3 : index
    %c0_55 = arith.constant 0 : index
    %91 = vector.load %arg9[%c3_54, %c0_55] : memref<8x1xf32, #tpu.memory_space<vmem>>, vector<1x1xf32>
    tpu.vector_store %arg9[%c3_54, %c0_55], %90 {strides = array<i32>} : memref<8x1xf32, #tpu.memory_space<vmem>>, vector<1x1xf32>,
    %92 = vector.broadcast %82 : i32 to vector<16x1xi32>
    %93 = arith.cmpi eq, %78, %92 : vector<16x1xi32>
    %c-2147483648_i32_56 = arith.constant -2147483648 : i32
    %94 = vector.broadcast %c-2147483648_i32_56 : i32 to vector<16x1xi32>
    %95 = arith.select %93, %94, %78 : vector<16x1xi1>, vector<16x1xi32>
    %96 = vector.shape_cast %95 : vector<16x1xi32> to vector<1x16x1xi32>
    %cst_57 = arith.constant dense<-2147483648> : vector<1xi32>
    %97 = vector.multi_reduction <maxsi>, %96, %cst_57 [1, 2] : vector<1x16x1xi32> to vector<1xi32>
    %98 = vector.shape_cast %97 : vector<1xi32> to vector<1x1x1xi32>
    %99 = vector.extract %98[0, 0, 0] : i32 from vector<1x1x1xi32>
    %c15_i32_58 = arith.constant 15 : i32
    %100 = arith.andi %99, %c15_i32_58 : i32
    %c15_i32_59 = arith.constant 15 : i32
    %101 = arith.subi %c15_i32_59, %100 : i32
    %c4 = arith.constant 4 : index
    %102 = memref.load %arg6[%c4] : memref<5xi32, #tpu.memory_space<smem>>
    memref.store %101, %arg6[%c4] : memref<5xi32, #tpu.memory_space<smem>>
    %103 = arith.index_cast %101 : i32 to index
    %c0_60 = arith.constant 0 : index
    %104 = vector.load %arg1[%103, %c0_60] : memref<16x128xf32, #tpu.memory_space<vmem>>, vector<1x128xf32>
    %c4_61 = arith.constant 4 : index
    %c0_62 = arith.constant 0 : index
    %105 = vector.load %arg5[%c4_61, %c0_62] : memref<8x128xf32, #tpu.memory_space<vmem>>, vector<1x128xf32>
    tpu.vector_store %arg5[%c4_61, %c0_62], %104 {strides = array<i32>} : memref<8x128xf32, #tpu.memory_space<vmem>>, vector<1x128xf32>,
    %106 = arith.index_cast %101 : i32 to index
    %c0_63 = arith.constant 0 : index
    %107 = vector.load %arg8[%106, %c0_63] : memref<16x1xf32, #tpu.memory_space<vmem>>, vector<1x1xf32>
    %c4_64 = arith.constant 4 : index
    %c0_65 = arith.constant 0 : index
    %108 = vector.load %arg9[%c4_64, %c0_65] : memref<8x1xf32, #tpu.memory_space<vmem>>, vector<1x1xf32>
    tpu.vector_store %arg9[%c4_64, %c0_65], %107 {strides = array<i32>} : memref<8x1xf32, #tpu.memory_space<vmem>>, vector<1x1xf32>,
    %c0_66 = arith.constant 0 : index
    %c0_67 = arith.constant 0 : index
    %109 = vector.load %arg9[%c0_66, %c0_67] : memref<8x1xf32, #tpu.memory_space<vmem>>, vector<8x1xf32>
    %110 = math.tanh %109 : vector<8x1xf32>
    %c0_68 = arith.constant 0 : index
    %c0_69 = arith.constant 0 : index
    %111 = vector.load %arg7[%c0_68, %c0_69] : memref<8x1xf32, #tpu.memory_space<vmem>>, vector<8x1xf32>
    tpu.vector_store %arg7[%c0_68, %c0_69], %110 {strides = array<i32>} : memref<8x1xf32, #tpu.memory_space<vmem>>, vector<8x1xf32>,
    %c0_70 = arith.constant 0 : index
    %c0_71 = arith.constant 0 : index
    %112 = vector.load %arg5[%c0_70, %c0_71] : memref<8x128xf32, #tpu.memory_space<vmem>>, vector<8x128xf32>
    %cst_72 = arith.constant 1.000000e+00 : f32
    %113 = vector.broadcast %cst_72 : f32 to vector<8x1xf32>
    %114 = arith.mulf %110, %113 : vector<8x1xf32>
    %115 = vector.broadcast %114 : vector<8x1xf32> to vector<8x128xf32>
    %116 = arith.mulf %112, %115 : vector<8x128xf32>
    %c0_73 = arith.constant 0 : index
    %c0_74 = arith.constant 0 : index
    %117 = vector.load %arg5[%c0_73, %c0_74] : memref<8x128xf32, #tpu.memory_space<vmem>>, vector<8x128xf32>
    tpu.vector_store %arg5[%c0_73, %c0_74], %116 {strides = array<i32>} : memref<8x128xf32, #tpu.memory_space<vmem>>, vector<8x128xf32>,
    return
  }
}

</mosaic_0001>

<llo_original>
// kernel: tpu_custom_call.1
$region0: #{tpu_custom_call.1}
  #allocation0 [shape = 'u32[]', space=smem, size = 0x4, offset = 0x4, fixed_abs, tag = 'smem constant byte address 0x4 - core index']
  #allocation1 [shape = 'u32[144,128]{1,0:T(1,128)}', space=vmem, size = 0x12000, scoped, tag = 'internal scratch']
  #allocation2 [shape = 'f32[16,1]{1,0:T(8,128)}', space=vmem, size = 0x2000, scoped, tag = 'scratch operand']
  #allocation3 [shape = 'f32[8,1]{1,0:T(8,128)}', space=vmem, size = 0x1000, scoped, tag = 'scratch operand']
  #allocation4 [shape = 'f32[1]{0:T(128)S(6)}', space=smem, size = 0x200, scoped, tag = 'scoped memory for tpu_custom_call.1']
  %s0 = inlined_call_operand.vmem [shape: f32[16,16], index: 0, kind: input, shape index: {}]
  %s1 = inlined_call_operand.vmem [shape: f32[16,128], index: 1, kind: input, shape index: {}]
  %s2 = inlined_call_operand.vmem [shape: f32[128,1], index: 2, kind: input, shape index: {}]
  %s3 = inlined_call_operand.vmem [shape: f32[128,1], index: 3, kind: input, shape index: {}]
  %s4 = inlined_call_operand.<no memory space> [shape: f32[1], index: 4, kind: input, shape index: {}]
  %s5 = inlined_call_operand.hbm [shape: f32[8,128], index: 5, kind: output, shape index: {0}]
  %s6 = inlined_call_operand.hbm [shape: s32[5], index: 6, kind: output, shape index: {1}]
  %s7 = inlined_call_operand.vmem [shape: f32[8,1], index: 7, kind: output, shape index: {2}]
  %8 = xla_tuple %s5, %s6, %s7
  %s9 = sld [smem:[#allocation0]]
  $region46: #{tpu_custom_call.1} parent=0
    _
  %s11 = ssub.s32 1, %s9
  %s12 = scalar_select 0, %s11, %s9
  %13 = sst [smem:[#allocation4]] %s4
  $region1: #{tpu_custom_call.1} parent=0
    #allocation5 [shape = 'u8[4096]{0}', space=vmem, size = 0x1000, scoped, tag = 'output window, operand 0, single buffered']
    #allocation6 [shape = 's32[1]{0}', space=sflag, size = 0x4, scoped, tag = 'scoped memory for tpu_custom_call.1']
    #allocation7 [shape = 's32[1]{0}', space=sflag, size = 0x4, scoped, tag = 'scoped memory for tpu_custom_call.1']
    #allocation8 [shape = 'u8[512]{0}', space=smem, size = 0x200, scoped, tag = 'output window, operand 1, single buffered']
    %14 = vsyncpa [#allocation6], 0
    %15 = vsyncpa [#allocation7], 0
    // Predicated region
    $region2: #{tpu_custom_call.1} parent=1 // pred_check
      _
    $region3: #{tpu_custom_call.1} parent=1 // pred_check_branch
      %17 = sbr.rel (0) target = $region5
    $region4: #{tpu_custom_call.1} parent=1 // pred_region
      _
    $region5: #{tpu_custom_call.1} parent=1 // pred_fallthru
      _
    // Predicated region
    $region6: #{tpu_custom_call.1} parent=1 // pred_check
      _
    $region7: #{tpu_custom_call.1} parent=1 // pred_check_branch
      %19 = sbr.rel (0) target = $region9
    $region8: #{tpu_custom_call.1} parent=1 // pred_region
      _
    $region9: #{tpu_custom_call.1} parent=1 // pred_fallthru
      _
    // Predicated region
    $region10: #{tpu_custom_call.1} parent=1 // pred_check
      _
    $region11: #{tpu_custom_call.1} parent=1 // pred_check_branch
      %21 = sbr.rel (0) target = $region13
    $region12: #{tpu_custom_call.1} parent=1 // pred_region
      _
    $region13: #{tpu_custom_call.1} parent=1 // pred_fallthru
      _
    // Predicated region
    $region14: #{tpu_custom_call.1} parent=1 // pred_check
      _
    $region15: #{tpu_custom_call.1} parent=1 // pred_check_branch
      %23 = sbr.rel (0) target = $region17
    $region16: #{tpu_custom_call.1} parent=1 // pred_region
      _
    $region17: #{tpu_custom_call.1} parent=1 // pred_fallthru
      _
    // Predicated region
    $region18: #{tpu_custom_call.1} parent=1 // pred_check
      _
    $region19: #{tpu_custom_call.1} parent=1 // pred_check_branch
      %25 = sbr.rel (0) target = $region21
    $region20: #{tpu_custom_call.1} parent=1 // pred_region
      _
    $region21: #{tpu_custom_call.1} parent=1 // pred_fallthru
      _
    %v26 = vld [vmem:[%s1] sm:$0xff]
    %v27 = vld [vmem:[%s1 + $0x8] sm:$0xff]
    %v28 = vld [vmem:[%s2] sm:$0xff]
    %v29 = vld [vmem:[%s2 + $0x8] sm:$0xff]
    %v30 = vld [vmem:[%s2 + $0x10] sm:$0xff]
    %v31 = vld [vmem:[%s2 + $0x18] sm:$0xff]
    %v32 = vld [vmem:[%s2 + $0x20] sm:$0xff]
    %v33 = vld [vmem:[%s2 + $0x28] sm:$0xff]
    %v34 = vld [vmem:[%s2 + $0x30] sm:$0xff]
    %v35 = vld [vmem:[%s2 + $0x38] sm:$0xff]
    %v36 = vld [vmem:[%s2 + $0x40] sm:$0xff]
    %v37 = vld [vmem:[%s2 + $0x48] sm:$0xff]
    %v38 = vld [vmem:[%s2 + $0x50] sm:$0xff]
    %v39 = vld [vmem:[%s2 + $0x58] sm:$0xff]
    %v40 = vld [vmem:[%s2 + $0x60] sm:$0xff]
    %v41 = vld [vmem:[%s2 + $0x68] sm:$0xff]
    %v42 = vld [vmem:[%s2 + $0x70] sm:$0xff]
    %v43 = vld [vmem:[%s2 + $0x78] sm:$0xff]
    %44 = vmatprep.subr.mxu0 0.0
    %45 = vmatpush1.msra.mxu0 %v43
    %46 = vmatprep.subr.mxu0 0.0
    %47 = vmatpush1.msra.mxu0 %v42
    %48 = vmatprep.subr.mxu0 0.0
    %49 = vmatpush1.msra.mxu0 %v41
    %50 = vmatprep.subr.mxu0 0.0
    %51 = vmatpush1.msra.mxu0 %v40
    %52 = vmatprep.subr.mxu0 0.0
    %53 = vmatpush1.msra.mxu0 %v39
    %54 = vmatprep.subr.mxu0 0.0
    %55 = vmatpush1.msra.mxu0 %v38
    %56 = vmatprep.subr.mxu0 0.0
    %57 = vmatpush1.msra.mxu0 %v37
    %58 = vmatprep.subr.mxu0 0.0
    %59 = vmatpush1.msra.mxu0 %v36
    %60 = vmatprep.subr.mxu0 0.0
    %61 = vmatpush1.msra.mxu0 %v35
    %62 = vmatprep.subr.mxu0 0.0
    %63 = vmatpush1.msra.mxu0 %v34
    %64 = vmatprep.subr.mxu0 0.0
    %65 = vmatpush1.msra.mxu0 %v33
    %66 = vmatprep.subr.mxu0 0.0
    %67 = vmatpush1.msra.mxu0 %v32
    %68 = vmatprep.subr.mxu0 0.0
    %69 = vmatpush1.msra.mxu0 %v31
    %70 = vmatprep.subr.mxu0 0.0
    %71 = vmatpush1.msra.mxu0 %v30
    %72 = vmatprep.subr.mxu0 0.0
    %73 = vmatpush1.msra.mxu0 %v29
    %74 = vmatprep.subr.mxu0 0.0
    %75 = vmatpush1.msra.mxu0 %v28
    %76 = vmatprep.subr.mxu0 0.0
    %77 = vmatpush2.msra.mxu0 0.0
    %78 = vmatprep.subr.mxu0 0.0
    %79 = vmatpush2.msra.mxu0 0.0
    %80 = vmatprep.subr.mxu0 0.0
    %81 = vmatpush2.msra.mxu0 0.0
    %82 = vmatprep.subr.mxu0 0.0
    %83 = vmatpush2.msra.mxu0 0.0
    %84 = vmatprep.subr.mxu0 0.0
    %85 = vmatpush2.msra.mxu0 0.0
    %86 = vmatprep.subr.mxu0 0.0
    %87 = vmatpush2.msra.mxu0 0.0
    %88 = vmatprep.subr.mxu0 0.0
    %89 = vmatpush2.msra.mxu0 0.0
    %90 = vmatprep.subr.mxu0 0.0
    %91 = vmatpush2.msra.mxu0 0.0
    %92 = vmatprep.subr.mxu0 0.0
    %93 = vmatpush2.msra.mxu0 0.0
    %94 = vmatprep.subr.mxu0 0.0
    %95 = vmatpush2.msra.mxu0 0.0
    %96 = vmatprep.subr.mxu0 0.0
    %97 = vmatpush2.msra.mxu0 0.0
    %98 = vmatprep.subr.mxu0 0.0
    %99 = vmatpush2.msra.mxu0 0.0
    %100 = vmatprep.subr.mxu0 0.0
    %101 = vmatpush2.msra.mxu0 0.0
    %102 = vmatprep.subr.mxu0 0.0
    %103 = vmatpush2.msra.mxu0 0.0
    %104 = vmatprep.subr.mxu0 0.0
    %105 = vmatpush2.msra.mxu0 0.0
    %106 = vmatprep.subr.mxu0 0.0
    %107 = vmatpush2.msra.mxu0 0.0
    %108 = vmatprep.mubr.f32.mxu0 0.0
    %109 = vmatmul.mubr.f32.gmra.mxu0 %v26
    %v110 = vpop.f32.mrf.mxu0
    %v111 = vadd.f32 0.0, %v110
    %v112 = vpop.f32.mrf.mxu0
    %113 = vmatprep.mubr.f32.mxu0 0.0
    %114 = vmatmul.mubr.f32.gmra.mxu0 %v27
    %v115 = vpop.f32.mrf.mxu0
    %v116 = vadd.f32 0.0, %v115
    %v117 = vpop.f32.mrf.mxu0
    %118 = vdwg.mxu0
    %v119 = vld [vmem:[%s3] sm:$0xff]
    %v120 = vld [vmem:[%s3 + $0x8] sm:$0xff]
    %v121 = vld [vmem:[%s3 + $0x10] sm:$0xff]
    %v122 = vld [vmem:[%s3 + $0x18] sm:$0xff]
    %v123 = vld [vmem:[%s3 + $0x20] sm:$0xff]
    %v124 = vld [vmem:[%s3 + $0x28] sm:$0xff]
    %v125 = vld [vmem:[%s3 + $0x30] sm:$0xff]
    %v126 = vld [vmem:[%s3 + $0x38] sm:$0xff]
    %v127 = vld [vmem:[%s3 + $0x40] sm:$0xff]
    %v128 = vld [vmem:[%s3 + $0x48] sm:$0xff]
    %v129 = vld [vmem:[%s3 + $0x50] sm:$0xff]
    %v130 = vld [vmem:[%s3 + $0x58] sm:$0xff]
    %v131 = vld [vmem:[%s3 + $0x60] sm:$0xff]
    %v132 = vld [vmem:[%s3 + $0x68] sm:$0xff]
    %v133 = vld [vmem:[%s3 + $0x70] sm:$0xff]
    %v134 = vld [vmem:[%s3 + $0x78] sm:$0xff]
    %135 = vmatprep.subr.mxu0 0.0
    %136 = vmatpush1.msra.mxu0 %v134
    %137 = vmatprep.subr.mxu0 0.0
    %138 = vmatpush1.msra.mxu0 %v133
    %139 = vmatprep.subr.mxu0 0.0
    %140 = vmatpush1.msra.mxu0 %v132
    %141 = vmatprep.subr.mxu0 0.0
    %142 = vmatpush1.msra.mxu0 %v131
    %143 = vmatprep.subr.mxu0 0.0
    %144 = vmatpush1.msra.mxu0 %v130
    %145 = vmatprep.subr.mxu0 0.0
    %146 = vmatpush1.msra.mxu0 %v129
    %147 = vmatprep.subr.mxu0 0.0
    %148 = vmatpush1.msra.mxu0 %v128
    %149 = vmatprep.subr.mxu0 0.0
    %150 = vmatpush1.msra.mxu0 %v127
    %151 = vmatprep.subr.mxu0 0.0
    %152 = vmatpush1.msra.mxu0 %v126
    %153 = vmatprep.subr.mxu0 0.0
    %154 = vmatpush1.msra.mxu0 %v125
    %155 = vmatprep.subr.mxu0 0.0
    %156 = vmatpush1.msra.mxu0 %v124
    %157 = vmatprep.subr.mxu0 0.0
    %158 = vmatpush1.msra.mxu0 %v123
    %159 = vmatprep.subr.mxu0 0.0
    %160 = vmatpush1.msra.mxu0 %v122
    %161 = vmatprep.subr.mxu0 0.0
    %162 = vmatpush1.msra.mxu0 %v121
    %163 = vmatprep.subr.mxu0 0.0
    %164 = vmatpush1.msra.mxu0 %v120
    %165 = vmatprep.subr.mxu0 0.0
    %166 = vmatpush1.msra.mxu0 %v119
    %167 = vmatprep.subr.mxu0 0.0
    %168 = vmatpush2.msra.mxu0 0.0
    %169 = vmatprep.subr.mxu0 0.0
    %170 = vmatpush2.msra.mxu0 0.0
    %171 = vmatprep.subr.mxu0 0.0
    %172 = vmatpush2.msra.mxu0 0.0
    %173 = vmatprep.subr.mxu0 0.0
    %174 = vmatpush2.msra.mxu0 0.0
    %175 = vmatprep.subr.mxu0 0.0
    %176 = vmatpush2.msra.mxu0 0.0
    %177 = vmatprep.subr.mxu0 0.0
    %178 = vmatpush2.msra.mxu0 0.0
    %179 = vmatprep.subr.mxu0 0.0
    %180 = vmatpush2.msra.mxu0 0.0
    %181 = vmatprep.subr.mxu0 0.0
    %182 = vmatpush2.msra.mxu0 0.0
    %183 = vmatprep.subr.mxu0 0.0
    %184 = vmatpush2.msra.mxu0 0.0
    %185 = vmatprep.subr.mxu0 0.0
    %186 = vmatpush2.msra.mxu0 0.0
    %187 = vmatprep.subr.mxu0 0.0
    %188 = vmatpush2.msra.mxu0 0.0
    %189 = vmatprep.subr.mxu0 0.0
    %190 = vmatpush2.msra.mxu0 0.0
    %191 = vmatprep.subr.mxu0 0.0
    %192 = vmatpush2.msra.mxu0 0.0
    %193 = vmatprep.subr.mxu0 0.0
    %194 = vmatpush2.msra.mxu0 0.0
    %195 = vmatprep.subr.mxu0 0.0
    %196 = vmatpush2.msra.mxu0 0.0
    %197 = vmatprep.subr.mxu0 0.0
    %198 = vmatpush2.msra.mxu0 0.0
    %199 = vmatprep.mubr.f32.mxu0 0.0
    %200 = vmatmul.mubr.f32.gmra.mxu0 %v26
    %v201 = vpop.f32.mrf.mxu0
    %v202 = vadd.f32 0.0, %v201
    %v203 = vpop.f32.mrf.mxu0
    %204 = vmatprep.mubr.f32.mxu0 0.0
    %205 = vmatmul.mubr.f32.gmra.mxu0 %v27
    %v206 = vpop.f32.mrf.mxu0
    %v207 = vadd.f32 0.0, %v206
    %v208 = vpop.f32.mrf.mxu0
    %209 = vdwg.mxu0
    %v210 = vld [vmem:[%s0] sm:$0xff]
    %v211 = vld [vmem:[%s0 + $0x8] sm:$0xff]
    %vm212 = vcmask 130048
    %v214 = vsel %vm212, %v210, 0
    %v217 = vsel %vm212, %v211, 0
    %219 = vmatprep.subr.mxu0 0.0
    %220 = vmatpush1.msra.mxu0 0.0
    %221 = vmatprep.subr.mxu0 0.0
    %222 = vmatpush1.msra.mxu0 0.0
    %223 = vmatprep.subr.mxu0 0.0
    %224 = vmatpush1.msra.mxu0 0.0
    %225 = vmatprep.subr.mxu0 0.0
    %226 = vmatpush1.msra.mxu0 0.0
    %227 = vmatprep.subr.mxu0 0.0
    %228 = vmatpush1.msra.mxu0 0.0
    %229 = vmatprep.subr.mxu0 0.0
    %230 = vmatpush1.msra.mxu0 0.0
    %231 = vmatprep.subr.mxu0 0.0
    %232 = vmatpush1.msra.mxu0 0.0
    %233 = vmatprep.subr.mxu0 0.0
    %234 = vmatpush1.msra.mxu0 0.0
    %235 = vmatprep.subr.mxu0 0.0
    %236 = vmatpush1.msra.mxu0 0.0
    %237 = vmatprep.subr.mxu0 0.0
    %238 = vmatpush1.msra.mxu0 0.0
    %239 = vmatprep.subr.mxu0 0.0
    %240 = vmatpush1.msra.mxu0 0.0
    %241 = vmatprep.subr.mxu0 0.0
    %242 = vmatpush1.msra.mxu0 0.0
    %243 = vmatprep.subr.mxu0 0.0
    %244 = vmatpush1.msra.mxu0 0.0
    %245 = vmatprep.subr.mxu0 0.0
    %246 = vmatpush1.msra.mxu0 0.0
    %247 = vmatprep.subr.mxu0 0.0
    %248 = vmatpush1.msra.mxu0 %v116
    %249 = vmatprep.subr.mxu0 0.0
    %250 = vmatpush1.msra.mxu0 %v111
    %251 = vmatprep.subr.mxu0 0.0
    %252 = vmatpush2.msra.mxu0 0.0
    %253 = vmatprep.subr.mxu0 0.0
    %254 = vmatpush2.msra.mxu0 0.0
    %255 = vmatprep.subr.mxu0 0.0
    %256 = vmatpush2.msra.mxu0 0.0
    %257 = vmatprep.subr.mxu0 0.0
    %258 = vmatpush2.msra.mxu0 0.0
    %259 = vmatprep.subr.mxu0 0.0
    %260 = vmatpush2.msra.mxu0 0.0
    %261 = vmatprep.subr.mxu0 0.0
    %262 = vmatpush2.msra.mxu0 0.0
    %263 = vmatprep.subr.mxu0 0.0
    %264 = vmatpush2.msra.mxu0 0.0
    %265 = vmatprep.subr.mxu0 0.0
    %266 = vmatpush2.msra.mxu0 0.0
    %267 = vmatprep.subr.mxu0 0.0
    %268 = vmatpush2.msra.mxu0 0.0
    %269 = vmatprep.subr.mxu0 0.0
    %270 = vmatpush2.msra.mxu0 0.0
    %271 = vmatprep.subr.mxu0 0.0
    %272 = vmatpush2.msra.mxu0 0.0
    %273 = vmatprep.subr.mxu0 0.0
    %274 = vmatpush2.msra.mxu0 0.0
    %275 = vmatprep.subr.mxu0 0.0
    %276 = vmatpush2.msra.mxu0 0.0
    %277 = vmatprep.subr.mxu0 0.0
    %278 = vmatpush2.msra.mxu0 0.0
    %279 = vmatprep.subr.mxu0 0.0
    %280 = vmatpush2.msra.mxu0 0.0
    %281 = vmatprep.subr.mxu0 0.0
    %282 = vmatpush2.msra.mxu0 0.0
    %283 = vmatprep.mubr.f32.mxu0 0.0
    %284 = vmatmul.mubr.f32.gmra.mxu0 %v214
    %v285 = vpop.f32.mrf.mxu0
    %v286 = vadd.f32 %v202, %v285
    %v287 = vpop.f32.mrf.mxu0
    %288 = vmatprep.mubr.f32.mxu0 0.0
    %289 = vmatmul.mubr.f32.gmra.mxu0 %v217
    %v290 = vpop.f32.mrf.mxu0
    %v291 = vadd.f32 %v207, %v290
    %v292 = vpop.f32.mrf.mxu0
    %293 = vdwg.mxu0
    %s294 = sld [smem:[#allocation4]]
    %v295 = vstv %s294
    %v296 = vadd.f32 %v286, %v295
    %v297 = vadd.f32 %v291, %v295
    %vm298 = vcmask 7168
    %299 = vst.msk [vmem:[#allocation2] sm:$0xff] %vm298, %v296
    %300 = vst.msk [vmem:[#allocation2 + $0x8] sm:$0xff] %vm298, %v297
    %vm303 = vcmp.ge.s32.totalorder %v296, 0
    %vm304 = vcmp.ge.s32.totalorder %v297, 0
    %v305 = vxor.u32 %v296, 2147483647
    %v306 = vxor.u32 %v297, 2147483647
    %v307 = vsel %vm303, %v296, %v305
    %v308 = vsel %vm304, %v297, %v306
    %v309 = vlaneseq
    %v310 = vshrl.u32 %v309, 7
    %v311 = vadd.s32 %v310, 8
    %v312 = vand.u32 %v307, 4294967280
    %v313 = vand.u32 %v308, 4294967280
    %v314 = vsub.s32 15, %v310
    %v315 = vsub.s32 15, %v311
    %v316 = vor.u32 %v312, %v314
    %v317 = vor.u32 %v313, %v315
    %318 = vst [vmem:[#allocation5 + $0x5] sm:$0x7] 0.0
    %vm319 = vcmask 2048
    %320 = vst.msk [vmem:[#allocation3 + $0x5] sm:$0x7] %vm319, 0.0
    %v321 = vsel %vm298, %v316, 2147483648
    %v322 = vsel %vm298, %v317, 2147483648
    %vm323 = vcmp.gt.s32.totalorder %v321, %v322
    %v324 = vsel %vm323, %v321, %v322
    %v325 = vand.u32 %v324, 65535
    %v326 = vshra.s32 %v324, 16
    %v327 = vcvt.s32.f32 %v325
    %v328 = vcvt.s32.f32 %v326
    %329 = vmax.xlane.f32.xlu0 %v328
    %v330 = vpop.xlane.xlu0 %329
    %vm331 = vcmp.eq.f32.partialorder %v328, %v330
    %v332 = vsel %vm331, %v327, -inf
    %333 = vmax.xlane.f32.xlu0 %v332
    %v334 = vpop.xlane.xlu0 %333
    %v335 = vcvt.f32.s32 %v334
    %v336 = vcvt.f32.s32 %v330
    %v337 = vshll.u32 %v336, 16
    %v338 = vadd.s32 %v337, %v335
    %v339 = vrot.slane %v338, 4
    %vm340 = vcmp.gt.s32.totalorder %v338, %v339
    %v341 = vsel %vm340, %v338, %v339
    %v342 = vrot.slane %v341, 2
    %vm343 = vcmp.gt.s32.totalorder %v341, %v342
    %v344 = vsel %vm343, %v341, %v342
    %v345 = vrot.slane %v344, 1
    %vm346 = vcmp.gt.s32.totalorder %v344, %v345
    %v347 = vsel %vm346, %v344, %v345
    %s348 = vtos %v347
    %s349 = sand.u32 %s348, 15
    %s350 = ssub.s32 15, %s349
    %s351 = scalar_lea.smem [#allocation8], 0
    %352 = sst [smem:[%s351]] %s350
    %s353 = scalar_lea.vmem %s1, %s350
    %v354 = vld [vmem:[%s353] sm:$0x1]
    %355 = vst [vmem:[#allocation5] sm:$0x1] %v354
    %s356 = scalar_lea.vmem [#allocation2], %s350
    %v357 = vld [vmem:[%s356] sm:$0x1]
    %vm358 = vcmask 0
    %359 = vst.msk [vmem:[#allocation3] sm:$0x1] %vm358, %v357
    %v360 = vstv %s348
    %vm361 = vcmp.eq.s32.totalorder %v316, %v360
    %vm362 = vcmp.eq.s32.totalorder %v317, %v360
    %v363 = vsel %vm361, 2147483648, %v316
    %v364 = vsel %vm362, 2147483648, %v317
    %v365 = vsel %vm298, %v363, 2147483648
    %v366 = vsel %vm298, %v364, 2147483648
    %vm367 = vcmp.gt.s32.totalorder %v365, %v366
    %v368 = vsel %vm367, %v365, %v366
    %v369 = vand.u32 %v368, 65535
    %v370 = vshra.s32 %v368, 16
    %v371 = vcvt.s32.f32 %v369
    %v372 = vcvt.s32.f32 %v370
    %373 = vmax.xlane.f32.xlu0 %v372
    %v374 = vpop.xlane.xlu0 %373
    %vm375 = vcmp.eq.f32.partialorder %v372, %v374
    %v376 = vsel %vm375, %v371, -inf
    %377 = vmax.xlane.f32.xlu0 %v376
    %v378 = vpop.xlane.xlu0 %377
    %v379 = vcvt.f32.s32 %v378
    %v380 = vcvt.f32.s32 %v374
    %v381 = vshll.u32 %v380, 16
    %v382 = vadd.s32 %v381, %v379
    %v383 = vrot.slane %v382, 4
    %vm384 = vcmp.gt.s32.totalorder %v382, %v383
    %v385 = vsel %vm384, %v382, %v383
    %v386 = vrot.slane %v385, 2
    %vm387 = vcmp.gt.s32.totalorder %v385, %v386
    %v388 = vsel %vm387, %v385, %v386
    %v389 = vrot.slane %v388, 1
    %vm390 = vcmp.gt.s32.totalorder %v388, %v389
    %v391 = vsel %vm390, %v388, %v389
    %s392 = vtos %v391
    %s393 = sand.u32 %s392, 15
    %s394 = ssub.s32 15, %s393
    %s395 = scalar_lea.smem [#allocation8], 1
    %396 = sst [smem:[%s395]] %s394
    %s397 = scalar_lea.vmem %s1, %s394
    %v398 = vld [vmem:[%s397] sm:$0x1]
    %399 = vst [vmem:[#allocation5 + $0x1] sm:$0x1] %v398
    %s400 = scalar_lea.vmem [#allocation2], %s394
    %v401 = vld [vmem:[%s400] sm:$0x1]
    %402 = vst.msk [vmem:[#allocation3 + $0x1] sm:$0x1] %vm358, %v401
    %v403 = vstv %s392
    %vm404 = vcmp.eq.s32.totalorder %v363, %v403
    %vm405 = vcmp.eq.s32.totalorder %v364, %v403
    %v406 = vsel %vm404, 2147483648, %v363
    %v407 = vsel %vm405, 2147483648, %v364
    %v408 = vsel %vm298, %v406, 2147483648
    %v409 = vsel %vm298, %v407, 2147483648
    %vm410 = vcmp.gt.s32.totalorder %v408, %v409
    %v411 = vsel %vm410, %v408, %v409
    %v412 = vand.u32 %v411, 65535
    %v413 = vshra.s32 %v411, 16
    %v414 = vcvt.s32.f32 %v412
    %v415 = vcvt.s32.f32 %v413
    %416 = vmax.xlane.f32.xlu0 %v415
    %v417 = vpop.xlane.xlu0 %416
    %vm418 = vcmp.eq.f32.partialorder %v415, %v417
    %v419 = vsel %vm418, %v414, -inf
    %420 = vmax.xlane.f32.xlu0 %v419
    %v421 = vpop.xlane.xlu0 %420
    %v422 = vcvt.f32.s32 %v421
    %v423 = vcvt.f32.s32 %v417
    %v424 = vshll.u32 %v423, 16
    %v425 = vadd.s32 %v424, %v422
    %v426 = vrot.slane %v425, 4
    %vm427 = vcmp.gt.s32.totalorder %v425, %v426
    %v428 = vsel %vm427, %v425, %v426
    %v429 = vrot.slane %v428, 2
    %vm430 = vcmp.gt.s32.totalorder %v428, %v429
    %v431 = vsel %vm430, %v428, %v429
    %v432 = vrot.slane %v431, 1
    %vm433 = vcmp.gt.s32.totalorder %v431, %v432
    %v434 = vsel %vm433, %v431, %v432
    %s435 = vtos %v434
    %s436 = sand.u32 %s435, 15
    %s437 = ssub.s32 15, %s436
    %s438 = scalar_lea.smem [#allocation8], 2
    %439 = sst [smem:[%s438]] %s437
    %s440 = scalar_lea.vmem %s1, %s437
    %v441 = vld [vmem:[%s440] sm:$0x1]
    %442 = vst [vmem:[#allocation5 + $0x2] sm:$0x1] %v441
    %s443 = scalar_lea.vmem [#allocation2], %s437
    %v444 = vld [vmem:[%s443] sm:$0x1]
    %445 = vst.msk [vmem:[#allocation3 + $0x2] sm:$0x1] %vm358, %v444
    %v446 = vstv %s435
    %vm447 = vcmp.eq.s32.totalorder %v406, %v446
    %vm448 = vcmp.eq.s32.totalorder %v407, %v446
    %v449 = vsel %vm447, 2147483648, %v406
    %v450 = vsel %vm448, 2147483648, %v407
    %v451 = vsel %vm298, %v449, 2147483648
    %v452 = vsel %vm298, %v450, 2147483648
    %vm453 = vcmp.gt.s32.totalorder %v451, %v452
    %v454 = vsel %vm453, %v451, %v452
    %v455 = vand.u32 %v454, 65535
    %v456 = vshra.s32 %v454, 16
    %v457 = vcvt.s32.f32 %v455
    %v458 = vcvt.s32.f32 %v456
    %459 = vmax.xlane.f32.xlu0 %v458
    %v460 = vpop.xlane.xlu0 %459
    %vm461 = vcmp.eq.f32.partialorder %v458, %v460
    %v462 = vsel %vm461, %v457, -inf
    %463 = vmax.xlane.f32.xlu0 %v462
    %v464 = vpop.xlane.xlu0 %463
    %v465 = vcvt.f32.s32 %v464
    %v466 = vcvt.f32.s32 %v460
    %v467 = vshll.u32 %v466, 16
    %v468 = vadd.s32 %v467, %v465
    %v469 = vrot.slane %v468, 4
    %vm470 = vcmp.gt.s32.totalorder %v468, %v469
    %v471 = vsel %vm470, %v468, %v469
    %v472 = vrot.slane %v471, 2
    %vm473 = vcmp.gt.s32.totalorder %v471, %v472
    %v474 = vsel %vm473, %v471, %v472
    %v475 = vrot.slane %v474, 1
    %vm476 = vcmp.gt.s32.totalorder %v474, %v475
    %v477 = vsel %vm476, %v474, %v475
    %s478 = vtos %v477
    %s479 = sand.u32 %s478, 15
    %s480 = ssub.s32 15, %s479
    %s481 = scalar_lea.smem [#allocation8], 3
    %482 = sst [smem:[%s481]] %s480
    %s483 = scalar_lea.vmem %s1, %s480
    %v484 = vld [vmem:[%s483] sm:$0x1]
    %485 = vst [vmem:[#allocation5 + $0x3] sm:$0x1] %v484
    %s486 = scalar_lea.vmem [#allocation2], %s480
    %v487 = vld [vmem:[%s486] sm:$0x1]
    %488 = vst.msk [vmem:[#allocation3 + $0x3] sm:$0x1] %vm358, %v487
    %v489 = vstv %s478
    %vm490 = vcmp.eq.s32.totalorder %v449, %v489
    %vm491 = vcmp.eq.s32.totalorder %v450, %v489
    %v492 = vsel %vm490, 2147483648, %v449
    %v493 = vsel %vm491, 2147483648, %v450
    %v494 = vsel %vm298, %v492, 2147483648
    %v495 = vsel %vm298, %v493, 2147483648
    %vm496 = vcmp.gt.s32.totalorder %v494, %v495
    %v497 = vsel %vm496, %v494, %v495
    %v498 = vand.u32 %v497, 65535
    %v499 = vshra.s32 %v497, 16
    %v500 = vcvt.s32.f32 %v498
    %v501 = vcvt.s32.f32 %v499
    %502 = vmax.xlane.f32.xlu0 %v501
    %v503 = vpop.xlane.xlu0 %502
    %vm504 = vcmp.eq.f32.partialorder %v501, %v503
    %v505 = vsel %vm504, %v500, -inf
    %506 = vmax.xlane.f32.xlu0 %v505
    %v507 = vpop.xlane.xlu0 %506
    %v508 = vcvt.f32.s32 %v507
    %v509 = vcvt.f32.s32 %v503
    %v510 = vshll.u32 %v509, 16
    %v511 = vadd.s32 %v510, %v508
    %v512 = vrot.slane %v511, 4
    %vm513 = vcmp.gt.s32.totalorder %v511, %v512
    %v514 = vsel %vm513, %v511, %v512
    %v515 = vrot.slane %v514, 2
    %vm516 = vcmp.gt.s32.totalorder %v514, %v515
    %v517 = vsel %vm516, %v514, %v515
    %v518 = vrot.slane %v517, 1
    %vm519 = vcmp.gt.s32.totalorder %v517, %v518
    %v520 = vsel %vm519, %v517, %v518
    %s521 = vtos %v520
    %s522 = sand.u32 %s521, 15
    %s523 = ssub.s32 15, %s522
    %s524 = scalar_lea.smem [#allocation8], 4
    %525 = sst [smem:[%s524]] %s523
    %s526 = scalar_lea.vmem %s1, %s523
    %v527 = vld [vmem:[%s526] sm:$0x1]
    %528 = vst [vmem:[#allocation5 + $0x4] sm:$0x1] %v527
    %s529 = scalar_lea.vmem [#allocation2], %s523
    %v530 = vld [vmem:[%s529] sm:$0x1]
    %531 = vst.msk [vmem:[#allocation3 + $0x4] sm:$0x1] %vm358, %v530
    %v532 = vld [vmem:[#allocation3] sm:$0xff]
    %v533 = vtanh.pop %v532
    %534 = vst.msk [vmem:[%s7] sm:$0xff] %vm298, %v533
    %v535 = vld [vmem:[#allocation5] sm:$0xff]
    %537 = vset.pattern.permute.xlu0 0
    %538 = vperm.xlu0 %537, %v533
    %v539 = vpop.permute.xlu0 %538
    %v541 = vmul.f32 %v535, %v539
    %542 = vst [vmem:[#allocation5] sm:$0xff] %v541
    // Predicated region
    $region22: #{tpu_custom_call.1} parent=1 // pred_check
      _
    $region23: #{tpu_custom_call.1} parent=1 // pred_check_branch
      %544 = sbr.rel (0) target = $region25
    $region24: #{tpu_custom_call.1} parent=1 // pred_region
      %s546 = ssub.s32 128, 128
      %547 = vsyncadd [#allocation6], %s546
      %s549 = sshll.u32 [#allocation5], 4
      %s550 = int_to_ptr.vmem [resolvable:$true] %s549
      %552 = dma.vmem_to_hbm [thread:$0]  %s550, 128, %s5, [#allocation6]
    $region25: #{tpu_custom_call.1} parent=1 // pred_fallthru
      _
    // Predicated region
    $region26: #{tpu_custom_call.1} parent=1 // pred_check
      _
    $region27: #{tpu_custom_call.1} parent=1 // pred_check_branch
      %554 = sbr.rel (0) target = $region29
    $region28: #{tpu_custom_call.1} parent=1 // pred_region
      %s556 = ssub.s32 16, 16
      %557 = vsyncadd [#allocation7], %s556
      %560 = dma.smem_to_hbm [#allocation8], 16, %s6, [#allocation7]
    $region29: #{tpu_custom_call.1} parent=1 // pred_fallthru
      _
    // Predicated region
    $region30: #{tpu_custom_call.1} parent=1 // pred_check
      _
    $region31: #{tpu_custom_call.1} parent=1 // pred_check_branch
      %562 = sbr.rel (0) target = $region33
    $region32: #{tpu_custom_call.1} parent=1 // pred_region
      _
    $region33: #{tpu_custom_call.1} parent=1 // pred_fallthru
      _
    // Predicated region
    $region34: #{tpu_custom_call.1} parent=1 // pred_check
      _
    $region35: #{tpu_custom_call.1} parent=1 // pred_check_branch
      %564 = sbr.rel (0) target = $region37
    $region36: #{tpu_custom_call.1} parent=1 // pred_region
      %565 = dma.done [#allocation6], 128
    $region37: #{tpu_custom_call.1} parent=1 // pred_fallthru
      _
    // Predicated region
    $region38: #{tpu_custom_call.1} parent=1 // pred_check
      _
    $region39: #{tpu_custom_call.1} parent=1 // pred_check_branch
      %567 = sbr.rel (0) target = $region41
    $region40: #{tpu_custom_call.1} parent=1 // pred_region
      %568 = dma.done [#allocation7], 16
    $region41: #{tpu_custom_call.1} parent=1 // pred_fallthru
      _
    // Predicated region
    $region42: #{tpu_custom_call.1} parent=1 // pred_check
      _
    $region43: #{tpu_custom_call.1} parent=1 // pred_check_branch
      %570 = sbr.rel (0) target = $region45
    $region44: #{tpu_custom_call.1} parent=1 // pred_region
      _
    $region45: #{tpu_custom_call.1} parent=1 // pred_fallthru
      _
    %571 = sfence
    %572 = vsyncpa [#allocation6], 1
    %573 = vsyncpa [#allocation7], 1

</llo_original>
